<compile_context>
chip_gen: v7x
topology: tpu7x:2x2x1
jax: 0.10.0
libtpu: 0.0.40
codegen_flags: <defaults>
</compile_context>

<pallas_src>
import functools

import jax
import jax.numpy as jnp
from jax.experimental import pallas as pl
from jax.experimental.pallas import tpu as pltpu


def _round_up(x, m):
    return ((x + m - 1) // m) * m


def _mmodule_kernel(c_ref, s_ref, w_ref, b2_ref, o_ref, *, nb):
    # c_ref, s_ref, o_ref : (nb, C, TILE_P)  channels on sublanes, pixels on lanes
    # w_ref               : (C, C)           1x1 conv weight (out-ch x in-ch)
    # b2_ref              : (C, 1)           2 * bias (fused: conv(c)+conv(s) = W@(c+s)+2b)
    w = w_ref[...]
    b2 = b2_ref[...]
    for b in range(nb):                      # nb is tiny & static -> unrolled
        x = c_ref[b] + s_ref[b]
        y = jnp.dot(w, x, preferred_element_type=jnp.float32)
        o_ref[b] = (y + b2).astype(o_ref.dtype)


def mmodule_forward(c, s, weight, bias, *, max_tile_p=8192,
                    vmem_budget_bytes=14 << 20, target_grid_steps=8):
    """c, s: (N, C, H, W).  weight: (C, C, 1, 1).  bias: (C,)."""
    N, C, H, W = c.shape
    assert s.shape == c.shape
    HW = H * W
    bytes_per = jnp.dtype(c.dtype).itemsize

    # --- fold a few images per grid step when C is tiny (per-step compute trivial).
    nb = 1
    if C <= 8 and N > 1:
        for cand in (4, 2):
            if N % cand == 0:
                nb = cand
                break
    batch_steps = N // nb

    # --- honest VMEM sizing (sublane round-up + resident parameter buffers). ---
    sub = max(1, 32 // bytes_per)                   # sublane packing: 8 f32, 16 bf16
    c_sub = _round_up(C, sub)
    w_buf = c_sub * _round_up(C, 128) * bytes_per   # one weight buffer
    b_buf = _round_up(C, 8) * 128 * 4               # one f32 bias buffer
    resident = 2 * (w_buf + b_buf)                  # conservative: 2 param buffers
    per_col = 6 * nb * c_sub * bytes_per            # double-buffered c, s, out per lane col
    avail = max(vmem_budget_bytes - resident, per_col * 128)
    tile_vmem = max(128, (avail // per_col) // 128 * 128)

    hw_128 = _round_up(HW, 128)
    tile = min(max_tile_p, tile_vmem, hw_128)
    # Cap the tile so the grid keeps enough steps for the software pipeline,
    # but never drop below 512 lanes when H*W allows.
    needed_px = pl.cdiv(max(target_grid_steps, batch_steps), batch_steps)
    tile_steps_cap = _round_up(pl.cdiv(HW, needed_px), 128)
    tile = max(128, min(tile, max(tile_steps_cap, min(512, hw_128))))
    num_px_tiles = pl.cdiv(HW, tile)

    footprint = per_col * tile + resident + (1 << 20)      # + compiler scratch slack
    vmem_limit = int(min(max(footprint * 5 // 4, 32 << 20), 48 << 20))

    # --- layout glue: pure reshapes only (no pad/slice, no transpose, no extra HBM pass).
    c3 = c.reshape(N, C, HW)
    s3 = s.reshape(N, C, HW)
    w2 = weight.reshape(C, C).astype(c.dtype)              # (Cout, Cin)
    b2 = (2.0 * bias).reshape(C, 1).astype(jnp.float32)    # fused double bias

    act_spec = pl.BlockSpec((nb, C, tile), lambda n, j: (n, 0, j))

    def build(single_buffer_params):
        if single_buffer_params:
            # Grid-invariant blocks: a second buffer is never used for prefetch.
            w_spec = pl.BlockSpec((C, C), lambda n, j: (0, 0),
                                  pipeline_mode=pl.Buffered(1))
            b_spec = pl.BlockSpec((C, 1), lambda n, j: (0, 0),
                                  pipeline_mode=pl.Buffered(1))
        else:
            w_spec = pl.BlockSpec((C, C), lambda n, j: (0, 0))
            b_spec = pl.BlockSpec((C, 1), lambda n, j: (0, 0))
        return pl.pallas_call(
            functools.partial(_mmodule_kernel, nb=nb),
            out_shape=jax.ShapeDtypeStruct((N, C, HW), c.dtype),
            grid_spec=pltpu.PrefetchScalarGridSpec(
                num_scalar_prefetch=0,
                grid=(batch_steps, num_px_tiles),
                in_specs=[act_spec, act_spec, w_spec, b_spec],
                out_specs=pl.BlockSpec((nb, C, tile), lambda n, j: (n, 0, j)),
            ),
            compiler_params=pltpu.CompilerParams(
                dimension_semantics=("parallel", "parallel"),
                vmem_limit_bytes=vmem_limit),
        )

    try:
        out = build(True)(c3, s3, w2, b2)
    except Exception:  # pragma: no cover - JAX build without pipeline_mode support
        out = build(False)(c3, s3, w2, b2)

    return out.reshape(N, C, H, W)


if __name__ == "__main__":
    key = jax.random.PRNGKey(0)
    k_c, k_s, k_w, k_b = jax.random.split(key, 4)

    N, C, H, Wd = 2, 4, 16, 16  # in_ch = 4

    c = jax.random.normal(k_c, (N, C, H, Wd), dtype=jnp.float32)
    s = jax.random.normal(k_s, (N, C, H, Wd), dtype=jnp.float32)

    # Deterministic "nn.Conv2d(in_ch, in_ch, 1)" parameters (synthetic init).
    bound = 1.0 / jnp.sqrt(jnp.float32(C * 1 * 1))
    weight = jax.random.uniform(k_w, (C, C, 1, 1), jnp.float32, -bound, bound)
    bias = jax.random.uniform(k_b, (C,), jnp.float32, -bound, bound)

    out = mmodule_forward(c, s, weight, bias)
    out = jax.block_until_ready(out)

    # Pure-JAX reference: conv1x1(c) + conv1x1(s) with shared parameters.
    w2 = weight.reshape(C, C)
    ref = (jnp.einsum("nchw,oc->nohw", c, w2) + bias[None, :, None, None]) + \
          (jnp.einsum("nchw,oc->nohw", s, w2) + bias[None, :, None, None])
    assert out.shape == (N, C, H, Wd)
    assert jnp.allclose(out, ref, atol=1e-5, rtol=1e-5)

    print("KERNEL_OK")
</pallas_src>

<mosaic_0001>
module attributes {stable_mosaic.version = 11 : i64} {
  func.func @_mmodule_kernel(%arg0: i32, %arg1: i32, %arg2: memref<2x4x256xf32, #tpu.memory_space<vmem>>, %arg3: memref<2x4x256xf32, #tpu.memory_space<vmem>>, %arg4: memref<4x4xf32, #tpu.memory_space<vmem>>, %arg5: memref<4x1xf32, #tpu.memory_space<vmem>>, %arg6: memref<2x4x256xf32, #tpu.memory_space<vmem>>) attributes {dimension_semantics = [#tpu.dimension_semantics<parallel>, #tpu.dimension_semantics<parallel>], iteration_bounds = array<i64: 1, 1>, scalar_prefetch = 0 : i64, scratch_operands = 0 : i64, tpu.core_type = #tpu.core_type<tc>, window_params = [{transform_indices = @transform_0, window_bounds = array<i64: 2, 4, 256>}, {transform_indices = @transform_1, window_bounds = array<i64: 2, 4, 256>}, {pipeline_mode = #tpu.pipeline_mode<synchronous>, transform_indices = @transform_2, window_bounds = array<i64: 4, 4>}, {pipeline_mode = #tpu.pipeline_mode<synchronous>, transform_indices = @transform_3, window_bounds = array<i64: 4, 1>}, {transform_indices = @transform_4, window_bounds = array<i64: 2, 4, 256>}]} {
    %c0 = arith.constant 0 : index
    %c0_0 = arith.constant 0 : index
    %0 = vector.load %arg4[%c0, %c0_0] : memref<4x4xf32, #tpu.memory_space<vmem>>, vector<4x4xf32>
    %c0_1 = arith.constant 0 : index
    %c0_2 = arith.constant 0 : index
    %1 = vector.load %arg5[%c0_1, %c0_2] : memref<4x1xf32, #tpu.memory_space<vmem>>, vector<4x1xf32>
    %c0_3 = arith.constant 0 : index
    %c0_4 = arith.constant 0 : index
    %c0_5 = arith.constant 0 : index
    %2 = vector.load %arg2[%c0_3, %c0_4, %c0_5] : memref<2x4x256xf32, #tpu.memory_space<vmem>>, vector<1x4x256xf32>
    %3 = vector.shape_cast %2 : vector<1x4x256xf32> to vector<4x256xf32>
    %c0_6 = arith.constant 0 : index
    %c0_7 = arith.constant 0 : index
    %c0_8 = arith.constant 0 : index
    %4 = vector.load %arg3[%c0_6, %c0_7, %c0_8] : memref<2x4x256xf32, #tpu.memory_space<vmem>>, vector<1x4x256xf32>
    %5 = vector.shape_cast %4 : vector<1x4x256xf32> to vector<4x256xf32>
    %6 = arith.addf %3, %5 : vector<4x256xf32>
    %cst = arith.constant dense<0.000000e+00> : vector<4x256xf32>
    %7 = tpu.matmul %0, %6, %cst {dimension_numbers = #tpu.dot_dimension_numbers<[1], [0], [0], [1], [0, 0, 1, 1], [], []>} : vector<4x4xf32>, vector<4x256xf32>, vector<4x256xf32> -> vector<4x256xf32>
    %8 = vector.broadcast %1 : vector<4x1xf32> to vector<4x256xf32>
    %9 = arith.addf %7, %8 : vector<4x256xf32>
    %c0_9 = arith.constant 0 : index
    %c0_10 = arith.constant 0 : index
    %c0_11 = arith.constant 0 : index
    %10 = vector.load %arg6[%c0_9, %c0_10, %c0_11] : memref<2x4x256xf32, #tpu.memory_space<vmem>>, vector<1x4x256xf32>
    %11 = vector.shape_cast %10 : vector<1x4x256xf32> to vector<4x256xf32>
    %12 = vector.shape_cast %9 : vector<4x256xf32> to vector<1x4x256xf32>
    tpu.vector_store %arg6[%c0_9, %c0_10, %c0_11], %12 {strides = array<i32>} : memref<2x4x256xf32, #tpu.memory_space<vmem>>, vector<1x4x256xf32>,
    %c1 = arith.constant 1 : index
    %c0_12 = arith.constant 0 : index
    %c0_13 = arith.constant 0 : index
    %13 = vector.load %arg2[%c1, %c0_12, %c0_13] : memref<2x4x256xf32, #tpu.memory_space<vmem>>, vector<1x4x256xf32>
    %14 = vector.shape_cast %13 : vector<1x4x256xf32> to vector<4x256xf32>
    %c1_14 = arith.constant 1 : index
    %c0_15 = arith.constant 0 : index
    %c0_16 = arith.constant 0 : index
    %15 = vector.load %arg3[%c1_14, %c0_15, %c0_16] : memref<2x4x256xf32, #tpu.memory_space<vmem>>, vector<1x4x256xf32>
    %16 = vector.shape_cast %15 : vector<1x4x256xf32> to vector<4x256xf32>
    %17 = arith.addf %14, %16 : vector<4x256xf32>
    %cst_17 = arith.constant dense<0.000000e+00> : vector<4x256xf32>
    %18 = tpu.matmul %0, %17, %cst_17 {dimension_numbers = #tpu.dot_dimension_numbers<[1], [0], [0], [1], [0, 0, 1, 1], [], []>} : vector<4x4xf32>, vector<4x256xf32>, vector<4x256xf32> -> vector<4x256xf32>
    %19 = vector.broadcast %1 : vector<4x1xf32> to vector<4x256xf32>
    %20 = arith.addf %18, %19 : vector<4x256xf32>
    %c1_18 = arith.constant 1 : index
    %c0_19 = arith.constant 0 : index
    %c0_20 = arith.constant 0 : index
    %21 = vector.load %arg6[%c1_18, %c0_19, %c0_20] : memref<2x4x256xf32, #tpu.memory_space<vmem>>, vector<1x4x256xf32>
    %22 = vector.shape_cast %21 : vector<1x4x256xf32> to vector<4x256xf32>
    %23 = vector.shape_cast %20 : vector<4x256xf32> to vector<1x4x256xf32>
    tpu.vector_store %arg6[%c1_18, %c0_19, %c0_20], %23 {strides = array<i32>} : memref<2x4x256xf32, #tpu.memory_space<vmem>>, vector<1x4x256xf32>,
    return
  }
  func.func @transform_0(%arg0: i32, %arg1: i32) -> (i32, i32, i32) {
    %c0_i32 = arith.constant 0 : i32
    %c0_i32_0 = arith.constant 0 : i32
    return %arg0, %c0_i32, %arg1 : i32, i32, i32
  }
  func.func @transform_1(%arg0: i32, %arg1: i32) -> (i32, i32, i32) {
    %c0_i32 = arith.constant 0 : i32
    %c0_i32_0 = arith.constant 0 : i32
    return %arg0, %c0_i32, %arg1 : i32, i32, i32
  }
  func.func @transform_2(%arg0: i32, %arg1: i32) -> (i32, i32) {
    %c0_i32 = arith.constant 0 : i32
    %c0_i32_0 = arith.constant 0 : i32
    %c0_i32_1 = arith.constant 0 : i32
    return %c0_i32, %c0_i32_0 : i32, i32
  }
  func.func @transform_3(%arg0: i32, %arg1: i32) -> (i32, i32) {
    %c0_i32 = arith.constant 0 : i32
    %c0_i32_0 = arith.constant 0 : i32
    %c0_i32_1 = arith.constant 0 : i32
    return %c0_i32, %c0_i32_0 : i32, i32
  }
  func.func @transform_4(%arg0: i32, %arg1: i32) -> (i32, i32, i32) {
    %c0_i32 = arith.constant 0 : i32
    %c0_i32_0 = arith.constant 0 : i32
    return %arg0, %c0_i32, %arg1 : i32, i32, i32
  }
}

module attributes {stable_mosaic.version = 11 : i64} {
  func.func @_mmodule_kernel(%arg0: i32, %arg1: i32, %arg2: memref<2x4x256xf32, #tpu.memory_space<vmem>>, %arg3: memref<2x4x256xf32, #tpu.memory_space<vmem>>, %arg4: memref<4x4xf32, #tpu.memory_space<vmem>>, %arg5: memref<4x1xf32, #tpu.memory_space<vmem>>, %arg6: memref<2x4x256xf32, #tpu.memory_space<vmem>>) attributes {dimension_semantics = [#tpu.dimension_semantics<parallel>, #tpu.dimension_semantics<parallel>], iteration_bounds = array<i64: 1, 1>, scalar_prefetch = 0 : i64, scratch_operands = 0 : i64, tpu.core_type = #tpu.core_type<tc>, window_params = [{transform_indices = @transform_0, window_bounds = array<i64: 2, 4, 256>}, {transform_indices = @transform_1, window_bounds = array<i64: 2, 4, 256>}, {pipeline_mode = #tpu.pipeline_mode<synchronous>, transform_indices = @transform_2, window_bounds = array<i64: 4, 4>}, {pipeline_mode = #tpu.pipeline_mode<synchronous>, transform_indices = @transform_3, window_bounds = array<i64: 4, 1>}, {transform_indices = @transform_4, window_bounds = array<i64: 2, 4, 256>}]} {
    %c0 = arith.constant 0 : index
    %c0_0 = arith.constant 0 : index
    %0 = vector.load %arg4[%c0, %c0_0] : memref<4x4xf32, #tpu.memory_space<vmem>>, vector<4x4xf32>
    %c0_1 = arith.constant 0 : index
    %c0_2 = arith.constant 0 : index
    %1 = vector.load %arg5[%c0_1, %c0_2] : memref<4x1xf32, #tpu.memory_space<vmem>>, vector<4x1xf32>
    %c0_3 = arith.constant 0 : index
    %c0_4 = arith.constant 0 : index
    %c0_5 = arith.constant 0 : index
    %2 = vector.load %arg2[%c0_3, %c0_4, %c0_5] : memref<2x4x256xf32, #tpu.memory_space<vmem>>, vector<1x4x256xf32>
    %3 = vector.shape_cast %2 : vector<1x4x256xf32> to vector<4x256xf32>
    %c0_6 = arith.constant 0 : index
    %c0_7 = arith.constant 0 : index
    %c0_8 = arith.constant 0 : index
    %4 = vector.load %arg3[%c0_6, %c0_7, %c0_8] : memref<2x4x256xf32, #tpu.memory_space<vmem>>, vector<1x4x256xf32>
    %5 = vector.shape_cast %4 : vector<1x4x256xf32> to vector<4x256xf32>
    %6 = arith.addf %3, %5 : vector<4x256xf32>
    %cst = arith.constant dense<0.000000e+00> : vector<4x256xf32>
    %7 = tpu.matmul %0, %6, %cst {dimension_numbers = #tpu.dot_dimension_numbers<[1], [0], [0], [1], [0, 0, 1, 1], [], []>} : vector<4x4xf32>, vector<4x256xf32>, vector<4x256xf32> -> vector<4x256xf32>
    %8 = vector.broadcast %1 : vector<4x1xf32> to vector<4x256xf32>
    %9 = arith.addf %7, %8 : vector<4x256xf32>
    %c0_9 = arith.constant 0 : index
    %c0_10 = arith.constant 0 : index
    %c0_11 = arith.constant 0 : index
    %10 = vector.load %arg6[%c0_9, %c0_10, %c0_11] : memref<2x4x256xf32, #tpu.memory_space<vmem>>, vector<1x4x256xf32>
    %11 = vector.shape_cast %10 : vector<1x4x256xf32> to vector<4x256xf32>
    %12 = vector.shape_cast %9 : vector<4x256xf32> to vector<1x4x256xf32>
    tpu.vector_store %arg6[%c0_9, %c0_10, %c0_11], %12 {strides = array<i32>} : memref<2x4x256xf32, #tpu.memory_space<vmem>>, vector<1x4x256xf32>,
    %c1 = arith.constant 1 : index
    %c0_12 = arith.constant 0 : index
    %c0_13 = arith.constant 0 : index
    %13 = vector.load %arg2[%c1, %c0_12, %c0_13] : memref<2x4x256xf32, #tpu.memory_space<vmem>>, vector<1x4x256xf32>
    %14 = vector.shape_cast %13 : vector<1x4x256xf32> to vector<4x256xf32>
    %c1_14 = arith.constant 1 : index
    %c0_15 = arith.constant 0 : index
    %c0_16 = arith.constant 0 : index
    %15 = vector.load %arg3[%c1_14, %c0_15, %c0_16] : memref<2x4x256xf32, #tpu.memory_space<vmem>>, vector<1x4x256xf32>
    %16 = vector.shape_cast %15 : vector<1x4x256xf32> to vector<4x256xf32>
    %17 = arith.addf %14, %16 : vector<4x256xf32>
    %cst_17 = arith.constant dense<0.000000e+00> : vector<4x256xf32>
    %18 = tpu.matmul %0, %17, %cst_17 {dimension_numbers = #tpu.dot_dimension_numbers<[1], [0], [0], [1], [0, 0, 1, 1], [], []>} : vector<4x4xf32>, vector<4x256xf32>, vector<4x256xf32> -> vector<4x256xf32>
    %19 = vector.broadcast %1 : vector<4x1xf32> to vector<4x256xf32>
    %20 = arith.addf %18, %19 : vector<4x256xf32>
    %c1_18 = arith.constant 1 : index
    %c0_19 = arith.constant 0 : index
    %c0_20 = arith.constant 0 : index
    %21 = vector.load %arg6[%c1_18, %c0_19, %c0_20] : memref<2x4x256xf32, #tpu.memory_space<vmem>>, vector<1x4x256xf32>
    %22 = vector.shape_cast %21 : vector<1x4x256xf32> to vector<4x256xf32>
    %23 = vector.shape_cast %20 : vector<4x256xf32> to vector<1x4x256xf32>
    tpu.vector_store %arg6[%c1_18, %c0_19, %c0_20], %23 {strides = array<i32>} : memref<2x4x256xf32, #tpu.memory_space<vmem>>, vector<1x4x256xf32>,
    return
  }
  func.func @transform_0(%arg0: i32, %arg1: i32) -> (i32, i32, i32) {
    %c0_i32 = arith.constant 0 : i32
    %c0_i32_0 = arith.constant 0 : i32
    return %arg0, %c0_i32, %arg1 : i32, i32, i32
  }
  func.func @transform_1(%arg0: i32, %arg1: i32) -> (i32, i32, i32) {
    %c0_i32 = arith.constant 0 : i32
    %c0_i32_0 = arith.constant 0 : i32
    return %arg0, %c0_i32, %arg1 : i32, i32, i32
  }
  func.func @transform_2(%arg0: i32, %arg1: i32) -> (i32, i32) {
    %c0_i32 = arith.constant 0 : i32
    %c0_i32_0 = arith.constant 0 : i32
    %c0_i32_1 = arith.constant 0 : i32
    return %c0_i32, %c0_i32_0 : i32, i32
  }
  func.func @transform_3(%arg0: i32, %arg1: i32) -> (i32, i32) {
    %c0_i32 = arith.constant 0 : i32
    %c0_i32_0 = arith.constant 0 : i32
    %c0_i32_1 = arith.constant 0 : i32
    return %c0_i32, %c0_i32_0 : i32, i32
  }
  func.func @transform_4(%arg0: i32, %arg1: i32) -> (i32, i32, i32) {
    %c0_i32 = arith.constant 0 : i32
    %c0_i32_0 = arith.constant 0 : i32
    return %arg0, %c0_i32, %arg1 : i32, i32, i32
  }
}

</mosaic_0001>

<llo_original>
// kernel: tpu_custom_call.1
$region0: #{tpu_custom_call.1}
  #allocation0 [shape = 'u32[]', space=smem, size = 0x4, offset = 0x4, fixed_abs, tag = 'smem constant byte address 0x4 - core index']
  #allocation1 [shape = 'u32[144,128]{1,0:T(1,128)}', space=vmem, size = 0x12000, scoped, tag = 'internal scratch']
  %s0 = inlined_call_operand.hbm [shape: f32[2,4,256], index: 0, kind: input, shape index: {}]
  %s1 = inlined_call_operand.hbm [shape: f32[2,4,256], index: 1, kind: input, shape index: {}]
  %s2 = inlined_call_operand.vmem [shape: f32[4,4], index: 2, kind: input, shape index: {}]
  %s3 = inlined_call_operand.vmem [shape: f32[4,1], index: 3, kind: input, shape index: {}]
  %s4 = inlined_call_operand.hbm [shape: f32[2,4,256], index: 4, kind: output, shape index: {}]
  %s5 = sld [smem:[#allocation0]]
  $region34: #{tpu_custom_call.1} parent=0
    _
  %s7 = ssub.s32 1, %s5
  %s8 = scalar_select 0, %s7, %s5
  $region1: #{tpu_custom_call.1} parent=0
    #allocation2 [shape = 'u8[8192]{0}', space=vmem, size = 0x2000, scoped, tag = 'input window, operand 0, single buffered']
    #allocation3 [shape = 's32[1]{0}', space=sflag, size = 0x4, scoped, tag = 'scoped memory for tpu_custom_call.1']
    #allocation4 [shape = 's32[1]{0}', space=sflag, size = 0x4, scoped, tag = 'scoped memory for tpu_custom_call.1']
    #allocation5 [shape = 'u8[8192]{0}', space=vmem, size = 0x2000, scoped, tag = 'input window, operand 1, single buffered']
    #allocation6 [shape = 's32[1]{0}', space=sflag, size = 0x4, scoped, tag = 'scoped memory for tpu_custom_call.1']
    #allocation7 [shape = 'u8[8192]{0}', space=vmem, size = 0x2000, scoped, tag = 'output window, operand 0, single buffered']
    %9 = vsyncpa [#allocation3], 0
    %10 = vsyncpa [#allocation6], 0
    %11 = vsyncpa [#allocation4], 0
    // Predicated region
    $region2: #{tpu_custom_call.1} parent=1 // pred_check
      _
    $region3: #{tpu_custom_call.1} parent=1 // pred_check_branch
      %13 = sbr.rel (0) target = $region5
    $region4: #{tpu_custom_call.1} parent=1 // pred_region
      %s15 = ssub.s32 256, 256
      %16 = vsyncadd [#allocation3], %s15
      %s17 = sshll.u32 [#allocation2], 4
      %s18 = int_to_ptr.vmem [resolvable:$true] %s17
      %23 = dma.hbm_to_vmem [thread:$0]  %s0, 256, %s18, [#allocation3], 128, 128, 8
    $region5: #{tpu_custom_call.1} parent=1 // pred_fallthru
      _
    // Predicated region
    $region6: #{tpu_custom_call.1} parent=1 // pred_check
      _
    $region7: #{tpu_custom_call.1} parent=1 // pred_check_branch
      %25 = sbr.rel (0) target = $region9
    $region8: #{tpu_custom_call.1} parent=1 // pred_region
      %s27 = ssub.s32 256, 256
      %28 = vsyncadd [#allocation6], %s27
      %s29 = sshll.u32 [#allocation5], 4
      %s30 = int_to_ptr.vmem [resolvable:$true] %s29
      %35 = dma.hbm_to_vmem [thread:$0]  %s1, 256, %s30, [#allocation6], 128, 128, 8
    $region9: #{tpu_custom_call.1} parent=1 // pred_fallthru
      _
    // Predicated region
    $region10: #{tpu_custom_call.1} parent=1 // pred_check
      _
    $region11: #{tpu_custom_call.1} parent=1 // pred_check_branch
      %37 = sbr.rel (0) target = $region13
    $region12: #{tpu_custom_call.1} parent=1 // pred_region
      _
    $region13: #{tpu_custom_call.1} parent=1 // pred_fallthru
      _
    // Predicated region
    $region14: #{tpu_custom_call.1} parent=1 // pred_check
      _
    $region15: #{tpu_custom_call.1} parent=1 // pred_check_branch
      %39 = sbr.rel (0) target = $region17
    $region16: #{tpu_custom_call.1} parent=1 // pred_region
      _
    $region17: #{tpu_custom_call.1} parent=1 // pred_fallthru
      _
    // Predicated region
    $region18: #{tpu_custom_call.1} parent=1 // pred_check
      _
    $region19: #{tpu_custom_call.1} parent=1 // pred_check_branch
      %41 = sbr.rel (0) target = $region21
    $region20: #{tpu_custom_call.1} parent=1 // pred_region
      %42 = dma.done [#allocation3], 256
    $region21: #{tpu_custom_call.1} parent=1 // pred_fallthru
      _
    // Predicated region
    $region22: #{tpu_custom_call.1} parent=1 // pred_check
      _
    $region23: #{tpu_custom_call.1} parent=1 // pred_check_branch
      %44 = sbr.rel (0) target = $region25
    $region24: #{tpu_custom_call.1} parent=1 // pred_region
      %45 = dma.done [#allocation6], 256
    $region25: #{tpu_custom_call.1} parent=1 // pred_fallthru
      _
    %v46 = vld [vmem:[%s2] sm:$0xf]
    %v47 = vld [vmem:[%s3] sm:$0xf]
    %v48 = vld [vmem:[#allocation2] sm:$0xff]
    %v49 = vld [vmem:[#allocation5] sm:$0xff]
    %v50 = vadd.f32 %v48, %v49
    %52 = vset.pattern.permute.xlu0 0
    %53 = vperm.xlu0 %52, %v47
    %v54 = vpop.permute.xlu0 %53
    %v57 = vcombine.high %v50, %v50
    %vm58 = vcmask 31744
    %v60 = vsel %vm58, %v46, 0
    %vm62 = vcmask 1043456
    %v63 = vsel %vm62, %v50, 0
    %v65 = vsel %vm62, %v57, 0
    %67 = vmatprep.subr.mxu0 %v65
    %68 = vmatpush1.msra.mxu0 %v63
    %69 = vmatprep.subr.mxu0 0.0
    %70 = vmatpush1.msra.mxu0 0.0
    %71 = vmatprep.subr.mxu0 0.0
    %72 = vmatpush1.msra.mxu0 0.0
    %73 = vmatprep.subr.mxu0 0.0
    %74 = vmatpush1.msra.mxu0 0.0
    %75 = vmatprep.subr.mxu0 0.0
    %76 = vmatpush1.msra.mxu0 0.0
    %77 = vmatprep.subr.mxu0 0.0
    %78 = vmatpush1.msra.mxu0 0.0
    %79 = vmatprep.subr.mxu0 0.0
    %80 = vmatpush1.msra.mxu0 0.0
    %81 = vmatprep.subr.mxu0 0.0
    %82 = vmatpush1.msra.mxu0 0.0
    %83 = vmatprep.subr.mxu0 0.0
    %84 = vmatpush1.msra.mxu0 0.0
    %85 = vmatprep.subr.mxu0 0.0
    %86 = vmatpush1.msra.mxu0 0.0
    %87 = vmatprep.subr.mxu0 0.0
    %88 = vmatpush1.msra.mxu0 0.0
    %89 = vmatprep.subr.mxu0 0.0
    %90 = vmatpush1.msra.mxu0 0.0
    %91 = vmatprep.subr.mxu0 0.0
    %92 = vmatpush1.msra.mxu0 0.0
    %93 = vmatprep.subr.mxu0 0.0
    %94 = vmatpush1.msra.mxu0 0.0
    %95 = vmatprep.subr.mxu0 0.0
    %96 = vmatpush1.msra.mxu0 0.0
    %97 = vmatprep.subr.mxu0 0.0
    %98 = vmatpush1.msra.mxu0 0.0
    %99 = vmatprep.subr.mxu0 0.0
    %100 = vmatpush1.msra.mxu0 0.0
    %101 = vmatprep.subr.mxu0 0.0
    %102 = vmatpush1.msra.mxu0 0.0
    %103 = vmatprep.subr.mxu0 0.0
    %104 = vmatpush1.msra.mxu0 0.0
    %105 = vmatprep.subr.mxu0 0.0
    %106 = vmatpush1.msra.mxu0 0.0
    %107 = vmatprep.subr.mxu0 0.0
    %108 = vmatpush1.msra.mxu0 0.0
    %109 = vmatprep.subr.mxu0 0.0
    %110 = vmatpush1.msra.mxu0 0.0
    %111 = vmatprep.subr.mxu0 0.0
    %112 = vmatpush1.msra.mxu0 0.0
    %113 = vmatprep.subr.mxu0 0.0
    %114 = vmatpush1.msra.mxu0 0.0
    %115 = vmatprep.subr.mxu0 0.0
    %116 = vmatpush1.msra.mxu0 0.0
    %117 = vmatprep.subr.mxu0 0.0
    %118 = vmatpush1.msra.mxu0 0.0
    %119 = vmatprep.subr.mxu0 0.0
    %120 = vmatpush1.msra.mxu0 0.0
    %121 = vmatprep.subr.mxu0 0.0
    %122 = vmatpush1.msra.mxu0 0.0
    %123 = vmatprep.subr.mxu0 0.0
    %124 = vmatpush1.msra.mxu0 0.0
    %125 = vmatprep.subr.mxu0 0.0
    %126 = vmatpush1.msra.mxu0 0.0
    %127 = vmatprep.subr.mxu0 0.0
    %128 = vmatpush1.msra.mxu0 0.0
    %129 = vmatprep.subr.mxu0 0.0
    %130 = vmatpush1.msra.mxu0 0.0
    %131 = vmatprep.mubr.f32.mxu0 0.0
    %132 = vmatmul.mubr.f32.gmra.mrb[0].mxu0 %v60
    %v133 = vpop.f32.mrb[0].mxu0
    %v134 = vadd.f32 %v54, %v133
    %v135 = vpop.f32.mrb[0].mxu0
    %v136 = vadd.f32 %v54, %v135
    %137 = vdwg.mxu0
    %v140 = vcombine.low %v134, %v136
    %142 = vst [vmem:[#allocation7] sm:$0xff] %v140
    %s143 = scalar_lea.vmem [#allocation2], 8
    %v144 = vld [vmem:[%s143] sm:$0xff]
    %s145 = scalar_lea.vmem [#allocation5], 8
    %v146 = vld [vmem:[%s145] sm:$0xff]
    %v147 = vadd.f32 %v144, %v146
    %v149 = vcombine.high %v147, %v147
    %v150 = vsel %vm62, %v147, 0
    %v152 = vsel %vm62, %v149, 0
    %154 = vmatprep.subr.mxu0 %v152
    %155 = vmatpush1.msra.mxu0 %v150
    %156 = vmatprep.subr.mxu0 0.0
    %157 = vmatpush1.msra.mxu0 0.0
    %158 = vmatprep.subr.mxu0 0.0
    %159 = vmatpush1.msra.mxu0 0.0
    %160 = vmatprep.subr.mxu0 0.0
    %161 = vmatpush1.msra.mxu0 0.0
    %162 = vmatprep.subr.mxu0 0.0
    %163 = vmatpush1.msra.mxu0 0.0
    %164 = vmatprep.subr.mxu0 0.0
    %165 = vmatpush1.msra.mxu0 0.0
    %166 = vmatprep.subr.mxu0 0.0
    %167 = vmatpush1.msra.mxu0 0.0
    %168 = vmatprep.subr.mxu0 0.0
    %169 = vmatpush1.msra.mxu0 0.0
    %170 = vmatprep.subr.mxu0 0.0
    %171 = vmatpush1.msra.mxu0 0.0
    %172 = vmatprep.subr.mxu0 0.0
    %173 = vmatpush1.msra.mxu0 0.0
    %174 = vmatprep.subr.mxu0 0.0
    %175 = vmatpush1.msra.mxu0 0.0
    %176 = vmatprep.subr.mxu0 0.0
    %177 = vmatpush1.msra.mxu0 0.0
    %178 = vmatprep.subr.mxu0 0.0
    %179 = vmatpush1.msra.mxu0 0.0
    %180 = vmatprep.subr.mxu0 0.0
    %181 = vmatpush1.msra.mxu0 0.0
    %182 = vmatprep.subr.mxu0 0.0
    %183 = vmatpush1.msra.mxu0 0.0
    %184 = vmatprep.subr.mxu0 0.0
    %185 = vmatpush1.msra.mxu0 0.0
    %186 = vmatprep.subr.mxu0 0.0
    %187 = vmatpush1.msra.mxu0 0.0
    %188 = vmatprep.subr.mxu0 0.0
    %189 = vmatpush1.msra.mxu0 0.0
    %190 = vmatprep.subr.mxu0 0.0
    %191 = vmatpush1.msra.mxu0 0.0
    %192 = vmatprep.subr.mxu0 0.0
    %193 = vmatpush1.msra.mxu0 0.0
    %194 = vmatprep.subr.mxu0 0.0
    %195 = vmatpush1.msra.mxu0 0.0
    %196 = vmatprep.subr.mxu0 0.0
    %197 = vmatpush1.msra.mxu0 0.0
    %198 = vmatprep.subr.mxu0 0.0
    %199 = vmatpush1.msra.mxu0 0.0
    %200 = vmatprep.subr.mxu0 0.0
    %201 = vmatpush1.msra.mxu0 0.0
    %202 = vmatprep.subr.mxu0 0.0
    %203 = vmatpush1.msra.mxu0 0.0
    %204 = vmatprep.subr.mxu0 0.0
    %205 = vmatpush1.msra.mxu0 0.0
    %206 = vmatprep.subr.mxu0 0.0
    %207 = vmatpush1.msra.mxu0 0.0
    %208 = vmatprep.subr.mxu0 0.0
    %209 = vmatpush1.msra.mxu0 0.0
    %210 = vmatprep.subr.mxu0 0.0
    %211 = vmatpush1.msra.mxu0 0.0
    %212 = vmatprep.subr.mxu0 0.0
    %213 = vmatpush1.msra.mxu0 0.0
    %214 = vmatprep.subr.mxu0 0.0
    %215 = vmatpush1.msra.mxu0 0.0
    %216 = vmatprep.subr.mxu0 0.0
    %217 = vmatpush1.msra.mxu0 0.0
    %218 = vmatprep.mubr.f32.mxu0 0.0
    %219 = vmatmul.mubr.f32.gmra.mrb[0].mxu0 %v60
    %v220 = vpop.f32.mrb[0].mxu0
    %v221 = vadd.f32 %v54, %v220
    %v222 = vpop.f32.mrb[0].mxu0
    %v223 = vadd.f32 %v54, %v222
    %224 = vdwg.mxu0
    %v227 = vcombine.low %v221, %v223
    %s229 = scalar_lea.vmem [#allocation7], 8
    %230 = vst [vmem:[%s229] sm:$0xff] %v227
    // Predicated region
    $region26: #{tpu_custom_call.1} parent=1 // pred_check
      _
    $region27: #{tpu_custom_call.1} parent=1 // pred_check_branch
      %232 = sbr.rel (0) target = $region29
    $region28: #{tpu_custom_call.1} parent=1 // pred_region
      %s234 = ssub.s32 256, 256
      %235 = vsyncadd [#allocation4], %s234
      %s236 = sshll.u32 [#allocation7], 4
      %s237 = int_to_ptr.vmem [resolvable:$true] %s236
      %242 = dma.vmem_to_hbm [thread:$0]  %s237, 256, %s4, [#allocation4], 128, 128, 8
    $region29: #{tpu_custom_call.1} parent=1 // pred_fallthru
      _
    // Predicated region
    $region30: #{tpu_custom_call.1} parent=1 // pred_check
      _
    $region31: #{tpu_custom_call.1} parent=1 // pred_check_branch
      %244 = sbr.rel (0) target = $region33
    $region32: #{tpu_custom_call.1} parent=1 // pred_region
      %245 = dma.done [#allocation4], 256
    $region33: #{tpu_custom_call.1} parent=1 // pred_fallthru
      _
    %246 = vsyncpa [#allocation3], 1
    %247 = vsyncpa [#allocation6], 1
    %248 = vsyncpa [#allocation4], 1

// kernel: tpu_custom_call.1
$region0: #{tpu_custom_call.1}
  #allocation0 [shape = 'u32[]', space=smem, size = 0x4, offset = 0x4, fixed_abs, tag = 'smem constant byte address 0x4 - core index']
  #allocation1 [shape = 'u32[144,128]{1,0:T(1,128)}', space=vmem, size = 0x12000, scoped, tag = 'internal scratch']
  %s0 = inlined_call_operand.hbm [shape: f32[2,4,256], index: 0, kind: input, shape index: {}]
  %s1 = inlined_call_operand.hbm [shape: f32[2,4,256], index: 1, kind: input, shape index: {}]
  %s2 = inlined_call_operand.vmem [shape: f32[4,4], index: 2, kind: input, shape index: {}]
  %s3 = inlined_call_operand.vmem [shape: f32[4,1], index: 3, kind: input, shape index: {}]
  %s4 = inlined_call_operand.hbm [shape: f32[2,4,256], index: 4, kind: output, shape index: {}]
  %s5 = sld [smem:[#allocation0]]
  $region34: #{tpu_custom_call.1} parent=0
    _
  %s7 = ssub.s32 1, %s5
  %s8 = scalar_select 0, %s7, %s5
  $region1: #{tpu_custom_call.1} parent=0
    #allocation2 [shape = 'u8[8192]{0}', space=vmem, size = 0x2000, scoped, tag = 'input window, operand 0, single buffered']
    #allocation3 [shape = 's32[1]{0}', space=sflag, size = 0x4, scoped, tag = 'scoped memory for tpu_custom_call.1']
    #allocation4 [shape = 's32[1]{0}', space=sflag, size = 0x4, scoped, tag = 'scoped memory for tpu_custom_call.1']
    #allocation5 [shape = 'u8[8192]{0}', space=vmem, size = 0x2000, scoped, tag = 'input window, operand 1, single buffered']
    #allocation6 [shape = 's32[1]{0}', space=sflag, size = 0x4, scoped, tag = 'scoped memory for tpu_custom_call.1']
    #allocation7 [shape = 'u8[8192]{0}', space=vmem, size = 0x2000, scoped, tag = 'output window, operand 0, single buffered']
    %9 = vsyncpa [#allocation3], 0
    %10 = vsyncpa [#allocation6], 0
    %11 = vsyncpa [#allocation4], 0
    // Predicated region
    $region2: #{tpu_custom_call.1} parent=1 // pred_check
      _
    $region3: #{tpu_custom_call.1} parent=1 // pred_check_branch
      %13 = sbr.rel (0) target = $region5
    $region4: #{tpu_custom_call.1} parent=1 // pred_region
      %s15 = ssub.s32 256, 256
      %16 = vsyncadd [#allocation3], %s15
      %s17 = sshll.u32 [#allocation2], 4
      %s18 = int_to_ptr.vmem [resolvable:$true] %s17
      %23 = dma.hbm_to_vmem [thread:$0]  %s0, 256, %s18, [#allocation3], 128, 128, 8
    $region5: #{tpu_custom_call.1} parent=1 // pred_fallthru
      _
    // Predicated region
    $region6: #{tpu_custom_call.1} parent=1 // pred_check
      _
    $region7: #{tpu_custom_call.1} parent=1 // pred_check_branch
      %25 = sbr.rel (0) target = $region9
    $region8: #{tpu_custom_call.1} parent=1 // pred_region
      %s27 = ssub.s32 256, 256
      %28 = vsyncadd [#allocation6], %s27
      %s29 = sshll.u32 [#allocation5], 4
      %s30 = int_to_ptr.vmem [resolvable:$true] %s29
      %35 = dma.hbm_to_vmem [thread:$0]  %s1, 256, %s30, [#allocation6], 128, 128, 8
    $region9: #{tpu_custom_call.1} parent=1 // pred_fallthru
      _
    // Predicated region
    $region10: #{tpu_custom_call.1} parent=1 // pred_check
      _
    $region11: #{tpu_custom_call.1} parent=1 // pred_check_branch
      %37 = sbr.rel (0) target = $region13
    $region12: #{tpu_custom_call.1} parent=1 // pred_region
      _
    $region13: #{tpu_custom_call.1} parent=1 // pred_fallthru
      _
    // Predicated region
    $region14: #{tpu_custom_call.1} parent=1 // pred_check
      _
    $region15: #{tpu_custom_call.1} parent=1 // pred_check_branch
      %39 = sbr.rel (0) target = $region17
    $region16: #{tpu_custom_call.1} parent=1 // pred_region
      _
    $region17: #{tpu_custom_call.1} parent=1 // pred_fallthru
      _
    // Predicated region
    $region18: #{tpu_custom_call.1} parent=1 // pred_check
      _
    $region19: #{tpu_custom_call.1} parent=1 // pred_check_branch
      %41 = sbr.rel (0) target = $region21
    $region20: #{tpu_custom_call.1} parent=1 // pred_region
      %42 = dma.done [#allocation3], 256
    $region21: #{tpu_custom_call.1} parent=1 // pred_fallthru
      _
    // Predicated region
    $region22: #{tpu_custom_call.1} parent=1 // pred_check
      _
    $region23: #{tpu_custom_call.1} parent=1 // pred_check_branch
      %44 = sbr.rel (0) target = $region25
    $region24: #{tpu_custom_call.1} parent=1 // pred_region
      %45 = dma.done [#allocation6], 256
    $region25: #{tpu_custom_call.1} parent=1 // pred_fallthru
      _
    %v46 = vld [vmem:[%s2] sm:$0xf]
    %v47 = vld [vmem:[%s3] sm:$0xf]
    %v48 = vld [vmem:[#allocation2] sm:$0xff]
    %v49 = vld [vmem:[#allocation5] sm:$0xff]
    %v50 = vadd.f32 %v48, %v49
    %52 = vset.pattern.permute.xlu0 0
    %53 = vperm.xlu0 %52, %v47
    %v54 = vpop.permute.xlu0 %53
    %v57 = vcombine.high %v50, %v50
    %vm58 = vcmask 31744
    %v60 = vsel %vm58, %v46, 0
    %vm62 = vcmask 1043456
    %v63 = vsel %vm62, %v50, 0
    %v65 = vsel %vm62, %v57, 0
    %67 = vmatprep.subr.mxu0 %v65
    %68 = vmatpush1.msra.mxu0 %v63
    %69 = vmatprep.subr.mxu0 0.0
    %70 = vmatpush1.msra.mxu0 0.0
    %71 = vmatprep.subr.mxu0 0.0
    %72 = vmatpush1.msra.mxu0 0.0
    %73 = vmatprep.subr.mxu0 0.0
    %74 = vmatpush1.msra.mxu0 0.0
    %75 = vmatprep.subr.mxu0 0.0
    %76 = vmatpush1.msra.mxu0 0.0
    %77 = vmatprep.subr.mxu0 0.0
    %78 = vmatpush1.msra.mxu0 0.0
    %79 = vmatprep.subr.mxu0 0.0
    %80 = vmatpush1.msra.mxu0 0.0
    %81 = vmatprep.subr.mxu0 0.0
    %82 = vmatpush1.msra.mxu0 0.0
    %83 = vmatprep.subr.mxu0 0.0
    %84 = vmatpush1.msra.mxu0 0.0
    %85 = vmatprep.subr.mxu0 0.0
    %86 = vmatpush1.msra.mxu0 0.0
    %87 = vmatprep.subr.mxu0 0.0
    %88 = vmatpush1.msra.mxu0 0.0
    %89 = vmatprep.subr.mxu0 0.0
    %90 = vmatpush1.msra.mxu0 0.0
    %91 = vmatprep.subr.mxu0 0.0
    %92 = vmatpush1.msra.mxu0 0.0
    %93 = vmatprep.subr.mxu0 0.0
    %94 = vmatpush1.msra.mxu0 0.0
    %95 = vmatprep.subr.mxu0 0.0
    %96 = vmatpush1.msra.mxu0 0.0
    %97 = vmatprep.subr.mxu0 0.0
    %98 = vmatpush1.msra.mxu0 0.0
    %99 = vmatprep.subr.mxu0 0.0
    %100 = vmatpush1.msra.mxu0 0.0
    %101 = vmatprep.subr.mxu0 0.0
    %102 = vmatpush1.msra.mxu0 0.0
    %103 = vmatprep.subr.mxu0 0.0
    %104 = vmatpush1.msra.mxu0 0.0
    %105 = vmatprep.subr.mxu0 0.0
    %106 = vmatpush1.msra.mxu0 0.0
    %107 = vmatprep.subr.mxu0 0.0
    %108 = vmatpush1.msra.mxu0 0.0
    %109 = vmatprep.subr.mxu0 0.0
    %110 = vmatpush1.msra.mxu0 0.0
    %111 = vmatprep.subr.mxu0 0.0
    %112 = vmatpush1.msra.mxu0 0.0
    %113 = vmatprep.subr.mxu0 0.0
    %114 = vmatpush1.msra.mxu0 0.0
    %115 = vmatprep.subr.mxu0 0.0
    %116 = vmatpush1.msra.mxu0 0.0
    %117 = vmatprep.subr.mxu0 0.0
    %118 = vmatpush1.msra.mxu0 0.0
    %119 = vmatprep.subr.mxu0 0.0
    %120 = vmatpush1.msra.mxu0 0.0
    %121 = vmatprep.subr.mxu0 0.0
    %122 = vmatpush1.msra.mxu0 0.0
    %123 = vmatprep.subr.mxu0 0.0
    %124 = vmatpush1.msra.mxu0 0.0
    %125 = vmatprep.subr.mxu0 0.0
    %126 = vmatpush1.msra.mxu0 0.0
    %127 = vmatprep.subr.mxu0 0.0
    %128 = vmatpush1.msra.mxu0 0.0
    %129 = vmatprep.subr.mxu0 0.0
    %130 = vmatpush1.msra.mxu0 0.0
    %131 = vmatprep.mubr.f32.mxu0 0.0
    %132 = vmatmul.mubr.f32.gmra.mrb[0].mxu0 %v60
    %v133 = vpop.f32.mrb[0].mxu0
    %v134 = vadd.f32 %v54, %v133
    %v135 = vpop.f32.mrb[0].mxu0
    %v136 = vadd.f32 %v54, %v135
    %137 = vdwg.mxu0
    %v140 = vcombine.low %v134, %v136
    %142 = vst [vmem:[#allocation7] sm:$0xff] %v140
    %s143 = scalar_lea.vmem [#allocation2], 8
    %v144 = vld [vmem:[%s143] sm:$0xff]
    %s145 = scalar_lea.vmem [#allocation5], 8
    %v146 = vld [vmem:[%s145] sm:$0xff]
    %v147 = vadd.f32 %v144, %v146
    %v149 = vcombine.high %v147, %v147
    %v150 = vsel %vm62, %v147, 0
    %v152 = vsel %vm62, %v149, 0
    %154 = vmatprep.subr.mxu0 %v152
    %155 = vmatpush1.msra.mxu0 %v150
    %156 = vmatprep.subr.mxu0 0.0
    %157 = vmatpush1.msra.mxu0 0.0
    %158 = vmatprep.subr.mxu0 0.0
    %159 = vmatpush1.msra.mxu0 0.0
    %160 = vmatprep.subr.mxu0 0.0
    %161 = vmatpush1.msra.mxu0 0.0
    %162 = vmatprep.subr.mxu0 0.0
    %163 = vmatpush1.msra.mxu0 0.0
    %164 = vmatprep.subr.mxu0 0.0
    %165 = vmatpush1.msra.mxu0 0.0
    %166 = vmatprep.subr.mxu0 0.0
    %167 = vmatpush1.msra.mxu0 0.0
    %168 = vmatprep.subr.mxu0 0.0
    %169 = vmatpush1.msra.mxu0 0.0
    %170 = vmatprep.subr.mxu0 0.0
    %171 = vmatpush1.msra.mxu0 0.0
    %172 = vmatprep.subr.mxu0 0.0
    %173 = vmatpush1.msra.mxu0 0.0
    %174 = vmatprep.subr.mxu0 0.0
    %175 = vmatpush1.msra.mxu0 0.0
    %176 = vmatprep.subr.mxu0 0.0
    %177 = vmatpush1.msra.mxu0 0.0
    %178 = vmatprep.subr.mxu0 0.0
    %179 = vmatpush1.msra.mxu0 0.0
    %180 = vmatprep.subr.mxu0 0.0
    %181 = vmatpush1.msra.mxu0 0.0
    %182 = vmatprep.subr.mxu0 0.0
    %183 = vmatpush1.msra.mxu0 0.0
    %184 = vmatprep.subr.mxu0 0.0
    %185 = vmatpush1.msra.mxu0 0.0
    %186 = vmatprep.subr.mxu0 0.0
    %187 = vmatpush1.msra.mxu0 0.0
    %188 = vmatprep.subr.mxu0 0.0
    %189 = vmatpush1.msra.mxu0 0.0
    %190 = vmatprep.subr.mxu0 0.0
    %191 = vmatpush1.msra.mxu0 0.0
    %192 = vmatprep.subr.mxu0 0.0
    %193 = vmatpush1.msra.mxu0 0.0
    %194 = vmatprep.subr.mxu0 0.0
    %195 = vmatpush1.msra.mxu0 0.0
    %196 = vmatprep.subr.mxu0 0.0
    %197 = vmatpush1.msra.mxu0 0.0
    %198 = vmatprep.subr.mxu0 0.0
    %199 = vmatpush1.msra.mxu0 0.0
    %200 = vmatprep.subr.mxu0 0.0
    %201 = vmatpush1.msra.mxu0 0.0
    %202 = vmatprep.subr.mxu0 0.0
    %203 = vmatpush1.msra.mxu0 0.0
    %204 = vmatprep.subr.mxu0 0.0
    %205 = vmatpush1.msra.mxu0 0.0
    %206 = vmatprep.subr.mxu0 0.0
    %207 = vmatpush1.msra.mxu0 0.0
    %208 = vmatprep.subr.mxu0 0.0
    %209 = vmatpush1.msra.mxu0 0.0
    %210 = vmatprep.subr.mxu0 0.0
    %211 = vmatpush1.msra.mxu0 0.0
    %212 = vmatprep.subr.mxu0 0.0
    %213 = vmatpush1.msra.mxu0 0.0
    %214 = vmatprep.subr.mxu0 0.0
    %215 = vmatpush1.msra.mxu0 0.0
    %216 = vmatprep.subr.mxu0 0.0
    %217 = vmatpush1.msra.mxu0 0.0
    %218 = vmatprep.mubr.f32.mxu0 0.0
    %219 = vmatmul.mubr.f32.gmra.mrb[0].mxu0 %v60
    %v220 = vpop.f32.mrb[0].mxu0
    %v221 = vadd.f32 %v54, %v220
    %v222 = vpop.f32.mrb[0].mxu0
    %v223 = vadd.f32 %v54, %v222
    %224 = vdwg.mxu0
    %v227 = vcombine.low %v221, %v223
    %s229 = scalar_lea.vmem [#allocation7], 8
    %230 = vst [vmem:[%s229] sm:$0xff] %v227
    // Predicated region
    $region26: #{tpu_custom_call.1} parent=1 // pred_check
      _
    $region27: #{tpu_custom_call.1} parent=1 // pred_check_branch
      %232 = sbr.rel (0) target = $region29
    $region28: #{tpu_custom_call.1} parent=1 // pred_region
      %s234 = ssub.s32 256, 256
      %235 = vsyncadd [#allocation4], %s234
      %s236 = sshll.u32 [#allocation7], 4
      %s237 = int_to_ptr.vmem [resolvable:$true] %s236
      %242 = dma.vmem_to_hbm [thread:$0]  %s237, 256, %s4, [#allocation4], 128, 128, 8
    $region29: #{tpu_custom_call.1} parent=1 // pred_fallthru
      _
    // Predicated region
    $region30: #{tpu_custom_call.1} parent=1 // pred_check
      _
    $region31: #{tpu_custom_call.1} parent=1 // pred_check_branch
      %244 = sbr.rel (0) target = $region33
    $region32: #{tpu_custom_call.1} parent=1 // pred_region
      %245 = dma.done [#allocation4], 256
    $region33: #{tpu_custom_call.1} parent=1 // pred_fallthru
      _
    %246 = vsyncpa [#allocation3], 1
    %247 = vsyncpa [#allocation6], 1
    %248 = vsyncpa [#allocation4], 1

</llo_original>
